<compile_context>
chip_gen: v6e
topology: v6e:2x2x1
jax: 0.10.0
libtpu: 0.0.40
codegen_flags: <defaults>
</compile_context>

<pallas_src>
import functools

import numpy as np
import jax
import jax.numpy as jnp
from jax import lax
from jax.experimental import pallas as pl
from jax.experimental.pallas import tpu as pltpu


def gagat_kernel(n_hid, mxu_dtype, x_ref, a_ref, w_ref, b_ref, out_ref):
    Bb, N, _ = a_ref.shape

    Xf = x_ref[...]              # (Bb*N, n_feat)        mxu_dtype (pre-cast)
    A = a_ref[...]               # (Bb, N, N)            mxu_dtype (pre-cast)
    Wp = w_ref[...]              # (n_feat, 2*n_hid+1)   mxu_dtype (pre-cast, packed)

    # Single fused projection (f32 accumulation):
    #   proj[:, :n_hid]        = h           = X @ W
    #   proj[:, n_hid:2n_hid]  = h @ (E+E.T) = X @ (W @ (E+E.T))
    #   proj[:, 2n_hid]        = gate logit (minus bias) = X @ (U_x + W @ U_h)
    proj = jnp.dot(Xf, Wp, preferred_element_type=jnp.float32)      # (Bb*N, 2*n_hid+1)

    h_f32 = proj[:, :n_hid]                                         # (Bb*N, n_hid) f32
    h = h_f32.astype(mxu_dtype).reshape(Bb, N, n_hid)
    hE = proj[:, n_hid:2 * n_hid].astype(mxu_dtype).reshape(Bb, N, n_hid)
    gate_logit = proj[:, 2 * n_hid:] + b_ref[...]                   # (Bb*N, 1) f32

    # attention logits = (h E) h^T + (h E^T) h^T = (h (E+E.T)) h^T, batched,
    # contracting the hidden dim of both operands (no materialized transpose).
    att = jnp.einsum('bqh,bkh->bqk', hE, h,
                     preferred_element_type=jnp.float32)            # (Bb, N, N) f32

    # mask = (A > 0); attention = softmax(att * mask, dim=-1) * A
    z = jnp.where(A > 0, att, 0.0)                 # masked logits -> 0 (as in reference)
    z = z - jnp.max(z, axis=-1, keepdims=True)     # numerically stable (exact rewrite)

    if jnp.dtype(mxu_dtype) == jnp.dtype(jnp.float32):
        p = jnp.exp(z)
        denom = jnp.sum(p, axis=-1, keepdims=True)
        attention = (p * pl.reciprocal(denom)) * A                  # exact reciprocal
    else:
        # bf16 elementwise/EUP chain (v6e/v7x); row sum accumulated in f32.
        p = jnp.exp(z.astype(mxu_dtype))
        denom = jnp.sum(p.astype(jnp.float32), axis=-1, keepdims=True)
        inv = pl.reciprocal(denom, approx=True).astype(mxu_dtype)
        attention = (p * inv) * A                                   # stays mxu_dtype

    # TODO(synk): F.dropout(attention, 0.3) is stochastic (PyTorch training-mode
    # default); omitted -> inference (identity) semantics.

    # h_prime = attention @ h (batched)
    h_prime = jnp.einsum('bqk,bkh->bqh', attention, h,
                         preferred_element_type=jnp.float32)        # (Bb, N, n_hid) f32

    gate = jax.nn.sigmoid(gate_logit)                               # (Bb*N, 1) f32
    out = gate * h_f32 + (1.0 - gate) * h_prime.reshape(Bb * N, n_hid)
    out_ref[...] = out.astype(out_ref.dtype)                        # (Bb*N, n_hid)


def _pick_block_b(B, target):
    """Largest divisor of B <= target; keep >= 2 grid steps when B > 1 (v7x 2 TCs)."""
    bb = min(target, B)
    while B % bb:
        bb -= 1
    if B > 1 and B // bb < 2:
        bb = max(d for d in range(1, B) if B % d == 0)
    return bb


def gagat_forward(X, A, W, E, U, b, *, mxu_dtype=jnp.bfloat16, block_b=8):
    """Batched forward. X: (B, N, n_feat) or (N, n_feat); A: (B, N, N) or (N, N)."""
    squeeze = X.ndim == 2
    if squeeze:
        X, A = X[None], A[None]

    B, N, n_feat = X.shape
    n_hid = W.shape[1]
    f32 = jnp.float32
    hi = lax.Precision.HIGHEST

    W = W.astype(f32)
    E = E.astype(f32)
    U = U.astype(f32)

    # Exact algebraic fold of all shared-weight projections (done once, f32):
    #   h = X W ;  h(E+E.T) = X (W (E+E.T)) ;  gate logit = X (U_x + W U_h) + b
    E_sym = E + E.T
    u_eff = U[:n_feat] + jnp.dot(W, U[n_feat:], precision=hi)             # (n_feat, 1)
    packed_W = jnp.concatenate(
        [W, jnp.dot(W, E_sym, precision=hi), u_eff], axis=1)              # (n_feat, 2*n_hid+1)

    # Pre-cast everything that feeds the MXU in the wrapper (grid-resident blocks).
    packed_W = packed_W.astype(mxu_dtype)
    X_flat = X.reshape(B * N, n_feat).astype(mxu_dtype)
    Ac = A.astype(mxu_dtype)
    bias = b.reshape(1, 1).astype(f32)

    Bb = _pick_block_b(B, block_b)
    grid = (B // Bb,)

    kernel = functools.partial(gagat_kernel, n_hid, mxu_dtype)

    flops = B * (2 * N * n_feat * (2 * n_hid + 1)   # fused projection
                 + 2 * N * N * n_hid                # attention logits
                 + 2 * N * N * n_hid)               # h_prime
    transcendentals = B * (N * N + 2 * N)           # exp + reciprocal + sigmoid
    itm = jnp.dtype(mxu_dtype).itemsize
    bytes_accessed = (X_flat.size * itm + Ac.size * itm
                      + packed_W.size * itm + bias.size * 4 + B * N * n_hid * 4)

    # Explicit scoped-VMEM budget (defaults: 16 MiB v5e / 32 MiB v6e, v7x).
    needed = (2 * Bb * N * (n_feat + N) * itm        # double-buffered X, A blocks
              + 2 * Bb * N * n_hid * 4               # double-buffered out block
              + packed_W.size * itm + 4096           # resident weights + bias
              + 8 * Bb * N * N * 4                   # att / softmax temporaries
              + 4 * Bb * N * (2 * n_hid + 1) * 4)    # proj / h / hE / h_prime
    vmem_limit = int(min(max(2 * needed, 32 * 1024 * 1024), 56 * 1024 * 1024))

    out = pl.pallas_call(
        kernel,
        out_shape=jax.ShapeDtypeStruct((B * N, n_hid), f32),
        grid=grid,
        in_specs=[
            pl.BlockSpec((Bb * N, n_feat), lambda bi: (bi, 0)),
            pl.BlockSpec((Bb, N, N), lambda bi: (bi, 0, 0)),
            pl.BlockSpec((n_feat, 2 * n_hid + 1), lambda bi: (0, 0)),
            pl.BlockSpec((1, 1), lambda bi: (0, 0)),
        ],
        out_specs=pl.BlockSpec((Bb * N, n_hid), lambda bi: (bi, 0)),
        compiler_params=pltpu.CompilerParams(
            dimension_semantics=("parallel",),
            vmem_limit_bytes=vmem_limit),
        cost_estimate=pl.CostEstimate(flops=flops,
                                      transcendentals=transcendentals,
                                      bytes_accessed=bytes_accessed),
    )(X_flat, Ac, packed_W, bias)

    out = out.reshape(B, N, n_hid)
    return out[0] if squeeze else out


def gagat_reference(X, A, W, E, U, b):
    """Pure-JAX single-graph reference mirroring the PyTorch forward (dropout = identity)."""
    h = X @ W
    att = (h @ E) @ h.T + (h @ E.T) @ h.T
    mask = (A > 0).astype(jnp.float32)
    attention = jax.nn.softmax(att * mask, axis=1) * A
    h_prime = attention @ h
    gate = jax.nn.sigmoid(jnp.concatenate([X, h], axis=1) @ U + b)
    return gate * h + (1.0 - gate) * h_prime


def xavier_uniform(key, shape, gain=1.414):
    fan_in, fan_out = shape[0], shape[1]
    bound = gain * np.sqrt(6.0 / (fan_in + fan_out))
    return jax.random.uniform(key, shape, jnp.float32, -bound, bound)


if __name__ == "__main__":
    B, N, n_feat, n_hid = 4, 16, 32, 32

    key = jax.random.PRNGKey(0)
    k_x, k_a, k_w, k_e, k_u, k_b = jax.random.split(key, 6)

    X = jax.random.normal(k_x, (B, N, n_feat), jnp.float32)
    # Sparse-ish non-negative adjacency with some zeros.
    A_raw = jax.random.uniform(k_a, (B, N, N), jnp.float32)
    A = jnp.where(A_raw > 0.5, A_raw, 0.0)

    # Deterministic parameter init (shapes from the module's __init__).
    W = xavier_uniform(k_w, (n_feat, n_hid))
    E = xavier_uniform(k_e, (n_hid, n_hid))
    U = xavier_uniform(k_u, (n_feat + n_hid, 1))
    b = xavier_uniform(k_b, (1, 1))

    ref = jax.vmap(lambda x, a: gagat_reference(x, a, W, E, U, b))(X, A)

    # f32 MXU path: checked against the pure-JAX reference (exact reciprocal).
    out_f32 = gagat_forward(X, A, W, E, U, b, mxu_dtype=jnp.float32)
    out_f32 = jax.block_until_ready(out_f32)
    np.testing.assert_allclose(np.asarray(out_f32), np.asarray(ref),
                               rtol=2e-3, atol=2e-3)

    # Production path (default bf16 MXU operands): smoke-test compile/run only —
    # bf16 attention logits deviate from the f32 reference by design.
    out_bf16 = jax.block_until_ready(gagat_forward(X, A, W, E, U, b))
    assert out_bf16.shape == ref.shape
    assert bool(jnp.isfinite(out_bf16).all())

    print("KERNEL_OK")
</pallas_src>

<mosaic_0001>
module attributes {stable_mosaic.version = 11 : i64} {
  func.func @gagat_kernel(%arg0: i32, %arg1: memref<32x32xf32, #tpu.memory_space<vmem>>, %arg2: memref<2x16x16xf32, #tpu.memory_space<vmem>>, %arg3: memref<32x65xf32, #tpu.memory_space<vmem>>, %arg4: memref<1x1xf32, #tpu.memory_space<vmem>>, %arg5: memref<32x32xf32, #tpu.memory_space<vmem>>) attributes {dimension_semantics = [#tpu.dimension_semantics<parallel>], iteration_bounds = array<i64: 2>, scalar_prefetch = 0 : i64, scratch_operands = 0 : i64, tpu.core_type = #tpu.core_type<tc>, window_params = [{transform_indices = @transform_0, window_bounds = array<i64: 32, 32>}, {transform_indices = @transform_1, window_bounds = array<i64: 2, 16, 16>}, {pipeline_mode = #tpu.pipeline_mode<synchronous>, transform_indices = @transform_2, window_bounds = array<i64: 32, 65>}, {pipeline_mode = #tpu.pipeline_mode<synchronous>, transform_indices = @transform_3, window_bounds = array<i64: 1, 1>}, {transform_indices = @transform_4, window_bounds = array<i64: 32, 32>}]} {
    %c0 = arith.constant 0 : index
    %c0_0 = arith.constant 0 : index
    %0 = vector.load %arg1[%c0, %c0_0] : memref<32x32xf32, #tpu.memory_space<vmem>>, vector<32x32xf32>
    %c0_1 = arith.constant 0 : index
    %c0_2 = arith.constant 0 : index
    %c0_3 = arith.constant 0 : index
    %1 = vector.load %arg2[%c0_1, %c0_2, %c0_3] : memref<2x16x16xf32, #tpu.memory_space<vmem>>, vector<2x16x16xf32>
    %c0_4 = arith.constant 0 : index
    %c0_5 = arith.constant 0 : index
    %2 = vector.load %arg3[%c0_4, %c0_5] : memref<32x65xf32, #tpu.memory_space<vmem>>, vector<32x65xf32>
    %cst = arith.constant dense<0.000000e+00> : vector<32x65xf32>
    %3 = tpu.matmul %0, %2, %cst {dimension_numbers = #tpu.dot_dimension_numbers<[1], [0], [0], [1], [0, 0, 1, 1], [], []>} : vector<32x32xf32>, vector<32x65xf32>, vector<32x65xf32> -> vector<32x65xf32>
    %4 = vector.extract_strided_slice %3 {offsets = [0, 0], sizes = [32, 32], strides = [1, 1]} : vector<32x65xf32> to vector<32x32xf32>
    %5 = vector.shape_cast %4 : vector<32x32xf32> to vector<2x16x32xf32>
    %6 = vector.extract_strided_slice %3 {offsets = [0, 32], sizes = [32, 32], strides = [1, 1]} : vector<32x65xf32> to vector<32x32xf32>
    %7 = vector.shape_cast %6 : vector<32x32xf32> to vector<2x16x32xf32>
    %8 = vector.extract_strided_slice %3 {offsets = [0, 64], sizes = [32, 1], strides = [1, 1]} : vector<32x65xf32> to vector<32x1xf32>
    %c0_6 = arith.constant 0 : index
    %c0_7 = arith.constant 0 : index
    %9 = vector.load %arg4[%c0_6, %c0_7] : memref<1x1xf32, #tpu.memory_space<vmem>>, vector<1x1xf32>
    %10 = vector.broadcast %9 : vector<1x1xf32> to vector<32x1xf32>
    %11 = arith.addf %8, %10 : vector<32x1xf32>
    "tpu.trace_start"() <{level = 10 : i32, message = "bqh,bkh->bqk"}> : () -> ()
    %cst_8 = arith.constant dense<0.000000e+00> : vector<2x16x16xf32>
    %12 = tpu.matmul %7, %5, %cst_8 {dimension_numbers = #tpu.dot_dimension_numbers<[2], [2], [1], [1], [0, 0, 0, 1, 1, 1], [0], [0]>} : vector<2x16x32xf32>, vector<2x16x32xf32>, vector<2x16x16xf32> -> vector<2x16x16xf32>
    %cst_9 = arith.constant 0.000000e+00 : f32
    "tpu.trace_stop"() : () -> ()
    %13 = vector.broadcast %cst_9 : f32 to vector<2x16x16xf32>
    %14 = arith.cmpf ogt, %1, %13 : vector<2x16x16xf32>
    %cst_10 = arith.constant 0.000000e+00 : f32
    %15 = vector.broadcast %cst_10 : f32 to vector<2x16x16xf32>
    %16 = arith.select %14, %12, %15 : vector<2x16x16xi1>, vector<2x16x16xf32>
    %cst_11 = arith.constant dense<0xFF800000> : vector<2x16xf32>
    %17 = vector.multi_reduction <maximumf>, %16, %cst_11 [2] : vector<2x16x16xf32> to vector<2x16xf32>
    %18 = vector.shape_cast %17 : vector<2x16xf32> to vector<2x16x1xf32>
    %19 = vector.broadcast %18 : vector<2x16x1xf32> to vector<2x16x16xf32>
    %20 = arith.subf %16, %19 : vector<2x16x16xf32>
    %21 = math.exp %20 : vector<2x16x16xf32>
    %cst_12 = arith.constant dense<0.000000e+00> : vector<2x16xf32>
    %22 = vector.multi_reduction <add>, %21, %cst_12 [2] : vector<2x16x16xf32> to vector<2x16xf32>
    %23 = vector.shape_cast %22 : vector<2x16xf32> to vector<2x16x1xf32>
    %24 = tpu.reciprocal %23 : vector<2x16x1xf32> -> vector<2x16x1xf32>
    %25 = vector.broadcast %24 : vector<2x16x1xf32> to vector<2x16x16xf32>
    %26 = arith.mulf %21, %25 : vector<2x16x16xf32>
    %27 = arith.mulf %26, %1 : vector<2x16x16xf32>
    "tpu.trace_start"() <{level = 10 : i32, message = "bqk,bkh->bqh"}> : () -> ()
    %cst_13 = arith.constant dense<0.000000e+00> : vector<2x16x32xf32>
    %28 = tpu.matmul %27, %5, %cst_13 {dimension_numbers = #tpu.dot_dimension_numbers<[2], [1], [1], [2], [0, 0, 0, 1, 1, 2], [0], [0]>} : vector<2x16x16xf32>, vector<2x16x32xf32>, vector<2x16x32xf32> -> vector<2x16x32xf32>
    "tpu.trace_stop"() : () -> ()
    %29 = arith.negf %11 : vector<32x1xf32>
    %30 = math.exp %29 : vector<32x1xf32>
    %cst_14 = arith.constant 1.000000e+00 : f32
    %31 = vector.broadcast %cst_14 : f32 to vector<32x1xf32>
    %32 = arith.addf %31, %30 : vector<32x1xf32>
    %33 = arith.divf %31, %32 : vector<32x1xf32>
    %34 = vector.broadcast %33 : vector<32x1xf32> to vector<32x32xf32>
    %35 = arith.mulf %34, %4 : vector<32x32xf32>
    %cst_15 = arith.constant 1.000000e+00 : f32
    %36 = vector.broadcast %cst_15 : f32 to vector<32x1xf32>
    %37 = arith.subf %36, %33 : vector<32x1xf32>
    %38 = vector.shape_cast %28 : vector<2x16x32xf32> to vector<32x32xf32>
    %39 = vector.broadcast %37 : vector<32x1xf32> to vector<32x32xf32>
    %40 = arith.mulf %39, %38 : vector<32x32xf32>
    %41 = arith.addf %35, %40 : vector<32x32xf32>
    %c0_16 = arith.constant 0 : index
    %c0_17 = arith.constant 0 : index
    %42 = vector.load %arg5[%c0_16, %c0_17] : memref<32x32xf32, #tpu.memory_space<vmem>>, vector<32x32xf32>
    tpu.vector_store %arg5[%c0_16, %c0_17], %41 {strides = array<i32>} : memref<32x32xf32, #tpu.memory_space<vmem>>, vector<32x32xf32>,
    return
  }
  func.func @transform_0(%arg0: i32) -> (i32, i32) {
    %c0_i32 = arith.constant 0 : i32
    %c0_i32_0 = arith.constant 0 : i32
    return %arg0, %c0_i32 : i32, i32
  }
  func.func @transform_1(%arg0: i32) -> (i32, i32, i32) {
    %c0_i32 = arith.constant 0 : i32
    %c0_i32_0 = arith.constant 0 : i32
    %c0_i32_1 = arith.constant 0 : i32
    return %arg0, %c0_i32, %c0_i32_0 : i32, i32, i32
  }
  func.func @transform_2(%arg0: i32) -> (i32, i32) {
    %c0_i32 = arith.constant 0 : i32
    %c0_i32_0 = arith.constant 0 : i32
    %c0_i32_1 = arith.constant 0 : i32
    return %c0_i32, %c0_i32_0 : i32, i32
  }
  func.func @transform_3(%arg0: i32) -> (i32, i32) {
    %c0_i32 = arith.constant 0 : i32
    %c0_i32_0 = arith.constant 0 : i32
    %c0_i32_1 = arith.constant 0 : i32
    return %c0_i32, %c0_i32_0 : i32, i32
  }
  func.func @transform_4(%arg0: i32) -> (i32, i32) {
    %c0_i32 = arith.constant 0 : i32
    %c0_i32_0 = arith.constant 0 : i32
    return %arg0, %c0_i32 : i32, i32
  }
}

</mosaic_0001>

<llo_original>
// kernel: tpu_custom_call.1
$region0: #{tpu_custom_call.1}
  #allocation0 [shape = 'u32[]', space=smem, size = 0x4, offset = 0x4, fixed_abs, tag = 'smem constant byte address 0x4 - core index']
  #allocation1 [shape = 'u32[144,128]{1,0:T(1,128)}', space=vmem, size = 0x12000, scoped, tag = 'internal scratch']
  #allocation2 [shape = 'f32[1,1]{1,0:T(1,128)S(1)}', space=vmem, size = 0x200, scoped, tag = 'scoped memory for tpu_custom_call.1']
  %s0 = inlined_call_operand.vmem [shape: f32[64,32], index: 0, kind: input, shape index: {}]
  %s1 = inlined_call_operand.vmem [shape: f32[4,16,16], index: 1, kind: input, shape index: {}]
  %s2 = inlined_call_operand.vmem [shape: f32[32,65], index: 2, kind: input, shape index: {}]
  %s3 = inlined_call_operand.<no memory space> [shape: f32[1,1], index: 3, kind: input, shape index: {}]
  %s4 = inlined_call_operand.vmem [shape: f32[64,32], index: 4, kind: output, shape index: {}]
  %s5 = sld [smem:[#allocation0]]
  $region49: #{tpu_custom_call.1} parent=0
    _
  %s7 = ssub.s32 1, %s5
  %s8 = scalar_select 0, %s7, %s5
  %v9 = vstv %s3
  %10 = vst [vmem:[#allocation2] sm:$0x1] %v9
  loop: start=0, step=1, limit=4
  $region2: #{tpu_custom_call.1} parent=0 // loop_pre_header
    _
  $region3: #{tpu_custom_call.1} parent=0 // loop_header
    %s12 = sphi 0, %s16
    %p13 = scmp.ge.s32.totalorder %s12, 4
    %s22 = sphi 0, %s24
    %s25 = sphi 0, %s22
    %s26 = sphi 0, %s25
    %s42 = sphi 0, %s26
    %s48 = sphi 0, %s50
    %s51 = sphi 0, %s48
    %s52 = sphi 0, %s51
    %s68 = sphi 0, %s52
    %s72 = sphi 0, %s72
    %s74 = sphi 0, %s72
    %s75 = sphi 0, %s74
    %s89 = sphi 0, %s75
    %s93 = sphi 0, %s93
    %s95 = sphi 0, %s93
    %s96 = sphi 0, %s95
    %s110 = sphi 0, %s96
    %s116 = sphi 0, %s118
    %s119 = sphi 0, %s116
    %s120 = sphi 0, %s119
    %s136 = sphi 0, %s120
  $region4: #{tpu_custom_call.1} parent=0 // loop_header_branch
    %15 = sbr.rel (%p13) target = $region8
  $region5: #{tpu_custom_call.1} parent=0 // loop_body
    %s17 = ssub.s32 %s12, 1
    %s18 = ssub.s32 %s12, 2
    %s19 = sadd.s32 %s12, 1
    %s20 = ssub.s32 %s12, %s19
    %p21 = scmp.eq.s32.totalorder %s20, 0
    %s23 = sadd.s32 %s22, 1
    %s24 = scalar_select %p21, %s22, %s23
    %p27 = pneg %p21
    %p28 = scmp.eq.s32.totalorder %s12, 1
    %p29 = por %p27, %p28
    %p30 = scmp.ne.s32.totalorder %s22, %s25
    %p31 = scmp.eq.s32.totalorder %s12, 0
    %p32 = por %p30, %p31
    %p33 = scmp.ne.s32.totalorder %s22, %s25
    %p34 = scmp.eq.s32.totalorder %s17, 1
    %p35 = por %p33, %p34
    %p36 = scmp.ne.s32.totalorder %s25, %s26
    %p37 = scmp.eq.s32.totalorder %s17, 0
    %p38 = por %p36, %p37
    %p39 = scmp.ne.s32.totalorder %s25, %s26
    %p40 = scmp.eq.s32.totalorder %s18, 1
    %p41 = por %p39, %p40
    %p43 = scmp.ne.s32.totalorder %s26, %s42
    %p44 = scmp.eq.s32.totalorder %s18, 0
    %p45 = por %p43, %p44
    %s46 = ssub.s32 %s12, %s19
    %p47 = scmp.eq.s32.totalorder %s46, 0
    %s49 = sadd.s32 %s48, 1
    %s50 = scalar_select %p47, %s48, %s49
    %p53 = pneg %p47
    %p54 = scmp.eq.s32.totalorder %s12, 1
    %p55 = por %p53, %p54
    %p56 = scmp.ne.s32.totalorder %s48, %s51
    %p57 = scmp.eq.s32.totalorder %s12, 0
    %p58 = por %p56, %p57
    %p59 = scmp.ne.s32.totalorder %s48, %s51
    %p60 = scmp.eq.s32.totalorder %s17, 1
    %p61 = por %p59, %p60
    %p62 = scmp.ne.s32.totalorder %s51, %s52
    %p63 = scmp.eq.s32.totalorder %s17, 0
    %p64 = por %p62, %p63
    %p65 = scmp.ne.s32.totalorder %s51, %s52
    %p66 = scmp.eq.s32.totalorder %s18, 1
    %p67 = por %p65, %p66
    %p69 = scmp.ne.s32.totalorder %s52, %s68
    %p70 = scmp.eq.s32.totalorder %s18, 0
    %p71 = por %p69, %p70
    %s73 = sadd.s32 %s72, 1
    %p76 = scmp.eq.s32.totalorder %s12, 1
    %p77 = scmp.ne.s32.totalorder %s72, %s74
    %p78 = scmp.eq.s32.totalorder %s12, 0
    %p79 = por %p77, %p78
    %p80 = scmp.ne.s32.totalorder %s72, %s74
    %p81 = scmp.eq.s32.totalorder %s17, 1
    %p82 = por %p80, %p81
    %p83 = scmp.ne.s32.totalorder %s74, %s75
    %p84 = scmp.eq.s32.totalorder %s17, 0
    %p85 = por %p83, %p84
    %p86 = scmp.ne.s32.totalorder %s74, %s75
    %p87 = scmp.eq.s32.totalorder %s18, 1
    %p88 = por %p86, %p87
    %p90 = scmp.ne.s32.totalorder %s75, %s89
    %p91 = scmp.eq.s32.totalorder %s18, 0
    %p92 = por %p90, %p91
    %s94 = sadd.s32 %s93, 1
    %p97 = scmp.eq.s32.totalorder %s12, 1
    %p98 = scmp.ne.s32.totalorder %s93, %s95
    %p99 = scmp.eq.s32.totalorder %s12, 0
    %p100 = por %p98, %p99
    %p101 = scmp.ne.s32.totalorder %s93, %s95
    %p102 = scmp.eq.s32.totalorder %s17, 1
    %p103 = por %p101, %p102
    %p104 = scmp.ne.s32.totalorder %s95, %s96
    %p105 = scmp.eq.s32.totalorder %s17, 0
    %p106 = por %p104, %p105
    %p107 = scmp.ne.s32.totalorder %s95, %s96
    %p108 = scmp.eq.s32.totalorder %s18, 1
    %p109 = por %p107, %p108
    %p111 = scmp.ne.s32.totalorder %s96, %s110
    %p112 = scmp.eq.s32.totalorder %s18, 0
    %p113 = por %p111, %p112
    %s114 = ssub.s32 %s12, %s19
    %p115 = scmp.eq.s32.totalorder %s114, 0
    %s117 = sadd.s32 %s116, 1
    %s118 = scalar_select %p115, %s116, %s117
    %p121 = pneg %p115
    %p122 = scmp.eq.s32.totalorder %s12, 1
    %p123 = por %p121, %p122
    %p124 = scmp.ne.s32.totalorder %s116, %s119
    %p125 = scmp.eq.s32.totalorder %s12, 0
    %p126 = por %p124, %p125
    %p127 = scmp.ne.s32.totalorder %s116, %s119
    %p128 = scmp.eq.s32.totalorder %s17, 1
    %p129 = por %p127, %p128
    %p130 = scmp.ne.s32.totalorder %s119, %s120
    %p131 = scmp.eq.s32.totalorder %s17, 0
    %p132 = por %p130, %p131
    %p133 = scmp.ne.s32.totalorder %s119, %s120
    %p134 = scmp.eq.s32.totalorder %s18, 1
    %p135 = por %p133, %p134
    %p137 = scmp.ne.s32.totalorder %s120, %s136
    %p138 = scmp.eq.s32.totalorder %s18, 0
    %p139 = por %p137, %p138
    %p140 = scmp.le.s32.totalorder 1, %s12
    %p141 = scmp.lt.s32.totalorder %s12, 3
    %p142 = pnand %p140, %p141
    %p143 = pneg %p142
    // Predicated region
    $region9: #{tpu_custom_call.1} parent=5 // pred_check
      _
    $region10: #{tpu_custom_call.1} parent=5 // pred_check_branch
      %145 = sbr.rel (%p142) target = $region12
    $region11: #{tpu_custom_call.1} parent=5 // pred_region
      %s146 = ssub.s32 %s12, 1
      // Predicated region
      $region13: #{tpu_custom_call.1} parent=11 // pred_check
        %p147 = pneg %p85
      $region14: #{tpu_custom_call.1} parent=11 // pred_check_branch
        %149 = sbr.rel (%p147) target = $region16
      $region15: #{tpu_custom_call.1} parent=11 // pred_region
        _
      $region16: #{tpu_custom_call.1} parent=11 // pred_fallthru
        _
      // Predicated region
      $region17: #{tpu_custom_call.1} parent=11 // pred_check
        %p150 = pneg %p106
      $region18: #{tpu_custom_call.1} parent=11 // pred_check_branch
        %152 = sbr.rel (%p150) target = $region20
      $region19: #{tpu_custom_call.1} parent=11 // pred_region
        _
      $region20: #{tpu_custom_call.1} parent=11 // pred_fallthru
        _
    $region12: #{tpu_custom_call.1} parent=5 // pred_fallthru
      _
    %p153 = scmp.lt.s32.totalorder %s12, 2
    // Predicated region
    $region21: #{tpu_custom_call.1} parent=5 // pred_check
      %p154 = pneg %p153
    $region22: #{tpu_custom_call.1} parent=5 // pred_check_branch
      %156 = sbr.rel (%p154) target = $region24
    $region23: #{tpu_custom_call.1} parent=5 // pred_region
      // Predicated region
      $region25: #{tpu_custom_call.1} parent=23 // pred_check
        %p157 = pneg %p32
      $region26: #{tpu_custom_call.1} parent=23 // pred_check_branch
        %159 = sbr.rel (%p157) target = $region28
      $region27: #{tpu_custom_call.1} parent=23 // pred_region
        %s160 = smul.u32 4, %s12
        %p161 = scmp.lt.s32.totalorder %s160, 7
        %s162 = scalar_select %p161, %s160, 7
        %s163 = smul.addr %s162, 8
        %s164 = scalar_lea.vmem %s0, %s163
        %s165 = smul.u32 4, %s12
      $region28: #{tpu_custom_call.1} parent=23 // pred_fallthru
        _
      // Predicated region
      $region29: #{tpu_custom_call.1} parent=23 // pred_check
        %p166 = pneg %p58
      $region30: #{tpu_custom_call.1} parent=23 // pred_check_branch
        %168 = sbr.rel (%p166) target = $region32
      $region31: #{tpu_custom_call.1} parent=23 // pred_region
        %s169 = smul.u32 2, %s12
        %p170 = scmp.lt.s32.totalorder %s169, 3
        %s171 = scalar_select %p170, %s169, 3
        %s172 = smul.addr %s171, 2
        %s173 = smul.addr %s172, 8
        %s174 = scalar_lea.vmem %s1, %s173
        %s175 = smul.u32 2, %s12
      $region32: #{tpu_custom_call.1} parent=23 // pred_fallthru
        _
    $region24: #{tpu_custom_call.1} parent=5 // pred_fallthru
      _
    %p176 = scmp.le.s32.totalorder 1, %s12
    %p177 = scmp.lt.s32.totalorder %s12, 3
    %p178 = pnand %p176, %p177
    %p179 = pneg %p178
    // Predicated region
    $region33: #{tpu_custom_call.1} parent=5 // pred_check
      _
    $region34: #{tpu_custom_call.1} parent=5 // pred_check_branch
      %181 = sbr.rel (%p178) target = $region36
    $region35: #{tpu_custom_call.1} parent=5 // pred_region
      %s182 = ssub.s32 %s12, 1
      %s183 = smul.u32 4, %s17
      %p184 = scmp.lt.s32.totalorder %s183, 7
      %s185 = scalar_select %p184, %s183, 7
      %s186 = smul.addr %s185, 8
      %s187 = scalar_lea.vmem %s0, %s186
      %p188 = pneg %p38
      %p189 = pneg %p35
      %s190 = smul.u32 2, %s17
      %p191 = scmp.lt.s32.totalorder %s190, 3
      %s192 = scalar_select %p191, %s190, 3
      %s193 = smul.addr %s192, 2
      %s194 = smul.addr %s193, 8
      %s195 = scalar_lea.vmem %s1, %s194
      %p196 = pneg %p64
      %p197 = pneg %p61
      %p198 = pneg %p85
      %p199 = pneg %p82
      %p200 = pneg %p106
      %p201 = pneg %p103
      %p202 = pneg %p132
      %p203 = pneg %p129
      %s204 = smul.u32 4, %s17
      %p205 = scmp.lt.s32.totalorder %s204, 7
      %s206 = scalar_select %p205, %s204, 7
      %s207 = smul.addr %s206, 8
      %s208 = scalar_lea.vmem %s4, %s207
      %s209 = smul.u32 4, %s17
      %p210 = scmp.lt.s32.totalorder %s209, 7
      %s211 = scalar_select %p210, %s209, 7
      %s212 = smul.addr %s211, 8
      %s213 = scalar_lea.vmem %s0, %s212
      %s214 = smul.u32 4, %s17
      %s215 = smul.u32 2, %s17
      %p216 = scmp.lt.s32.totalorder %s215, 3
      %s217 = scalar_select %p216, %s215, 3
      %s218 = smul.addr %s217, 2
      %s219 = smul.addr %s218, 8
      %s220 = scalar_lea.vmem %s1, %s219
      %s221 = smul.u32 2, %s17
      %s222 = smul.u32 4, %s17
      %p223 = scmp.lt.s32.totalorder %s222, 7
      %s224 = scalar_select %p223, %s222, 7
      %s225 = smul.addr %s224, 8
      %s226 = scalar_lea.vmem %s4, %s225
      %s227 = smul.u32 4, %s17
      %v228 = vld [vmem:[%s213] sm:$0xff]
      %v229 = vld [vmem:[%s213 + $0x8] sm:$0xff]
      %v230 = vld [vmem:[%s213 + $0x10] sm:$0xff]
      %v231 = vld [vmem:[%s213 + $0x18] sm:$0xff]
      %v232 = vld [vmem:[%s220] sm:$0xff]
      %v233 = vld [vmem:[%s220 + $0x8] sm:$0xff]
      %v234 = vld [vmem:[%s220 + $0x10] sm:$0xff]
      %v235 = vld [vmem:[%s220 + $0x18] sm:$0xff]
      %v236 = vld [vmem:[%s2] sm:$0xff]
      %v237 = vld [vmem:[%s2 + $0x8] sm:$0xff]
      %v238 = vld [vmem:[%s2 + $0x10] sm:$0xff]
      %v239 = vld [vmem:[%s2 + $0x18] sm:$0xff]
      %vm240 = vcmask 261120
      %v242 = vsel %vm240, %v228, 0
      %v245 = vsel %vm240, %v229, 0
      %v248 = vsel %vm240, %v230, 0
      %v251 = vsel %vm240, %v231, 0
      %253 = vmatprep.subr.mxu0 0.0
      %254 = vmatpush1.msra.mxu0 0.0
      %255 = vmatprep.subr.mxu0 0.0
      %256 = vmatpush1.msra.mxu0 0.0
      %257 = vmatprep.subr.mxu0 0.0
      %258 = vmatpush1.msra.mxu0 0.0
      %259 = vmatprep.subr.mxu0 0.0
      %260 = vmatpush1.msra.mxu0 0.0
      %261 = vmatprep.subr.mxu0 0.0
      %262 = vmatpush1.msra.mxu0 0.0
      %263 = vmatprep.subr.mxu0 0.0
      %264 = vmatpush1.msra.mxu0 0.0
      %265 = vmatprep.subr.mxu0 0.0
      %266 = vmatpush1.msra.mxu0 0.0
      %267 = vmatprep.subr.mxu0 0.0
      %268 = vmatpush1.msra.mxu0 0.0
      %269 = vmatprep.subr.mxu0 0.0
      %270 = vmatpush1.msra.mxu0 0.0
      %271 = vmatprep.subr.mxu0 0.0
      %272 = vmatpush1.msra.mxu0 0.0
      %273 = vmatprep.subr.mxu0 0.0
      %274 = vmatpush1.msra.mxu0 0.0
      %275 = vmatprep.subr.mxu0 0.0
      %276 = vmatpush1.msra.mxu0 0.0
      %277 = vmatprep.subr.mxu0 0.0
      %278 = vmatpush1.msra.mxu0 %v239
      %279 = vmatprep.subr.mxu0 0.0
      %280 = vmatpush1.msra.mxu0 %v238
      %281 = vmatprep.subr.mxu0 0.0
      %282 = vmatpush1.msra.mxu0 %v237
      %283 = vmatprep.subr.mxu0 0.0
      %284 = vmatpush1.msra.mxu0 %v236
      %285 = vmatprep.subr.mxu0 0.0
      %286 = vmatpush2.msra.mxu0 0.0
      %287 = vmatprep.subr.mxu0 0.0
      %288 = vmatpush2.msra.mxu0 0.0
      %289 = vmatprep.subr.mxu0 0.0
      %290 = vmatpush2.msra.mxu0 0.0
      %291 = vmatprep.subr.mxu0 0.0
      %292 = vmatpush2.msra.mxu0 0.0
      %293 = vmatprep.subr.mxu0 0.0
      %294 = vmatpush2.msra.mxu0 0.0
      %295 = vmatprep.subr.mxu0 0.0
      %296 = vmatpush2.msra.mxu0 0.0
      %297 = vmatprep.subr.mxu0 0.0
      %298 = vmatpush2.msra.mxu0 0.0
      %299 = vmatprep.subr.mxu0 0.0
      %300 = vmatpush2.msra.mxu0 0.0
      %301 = vmatprep.subr.mxu0 0.0
      %302 = vmatpush2.msra.mxu0 0.0
      %303 = vmatprep.subr.mxu0 0.0
      %304 = vmatpush2.msra.mxu0 0.0
      %305 = vmatprep.subr.mxu0 0.0
      %306 = vmatpush2.msra.mxu0 0.0
      %307 = vmatprep.subr.mxu0 0.0
      %308 = vmatpush2.msra.mxu0 0.0
      %309 = vmatprep.subr.mxu0 0.0
      %310 = vmatpush2.msra.mxu0 0.0
      %311 = vmatprep.subr.mxu0 0.0
      %312 = vmatpush2.msra.mxu0 0.0
      %313 = vmatprep.subr.mxu0 0.0
      %314 = vmatpush2.msra.mxu0 0.0
      %315 = vmatprep.subr.mxu0 0.0
      %316 = vmatpush2.msra.mxu0 0.0
      %317 = vmatprep.mubr.f32.mxu0 0.0
      %318 = vmatmul.mubr.f32.gmra.mxu0 %v242
      %v319 = vpop.f32.mrf.mxu0
      %v320 = vadd.f32 0.0, %v319
      %v321 = vpop.f32.mrf.mxu0
      %322 = vmatprep.mubr.f32.mxu0 0.0
      %323 = vmatmul.mubr.f32.gmra.mxu0 %v245
      %v324 = vpop.f32.mrf.mxu0
      %v325 = vadd.f32 0.0, %v324
      %v326 = vpop.f32.mrf.mxu0
      %327 = vmatprep.mubr.f32.mxu0 0.0
      %328 = vmatmul.mubr.f32.gmra.mxu0 %v248
      %v329 = vpop.f32.mrf.mxu0
      %v330 = vadd.f32 0.0, %v329
      %v331 = vpop.f32.mrf.mxu0
      %332 = vmatprep.mubr.f32.mxu0 0.0
      %333 = vmatmul.mubr.f32.gmra.mxu0 %v251
      %v334 = vpop.f32.mrf.mxu0
      %v335 = vadd.f32 0.0, %v334
      %v336 = vpop.f32.mrf.mxu0
      %337 = vdwg.mxu0
      %v338 = vld [vmem:[#allocation2] sm:$0x1]
      %v340 = vlaneseq
      %v341 = vshrl.u32 %v340, 7
      %v342 = vsub.s32 0, %v341
      %v343 = vrot.slane %v338, %v342
      %344 = vrot.lane.b32.xlu0 %v343, 64
      %v345 = vpop.permute.xlu0 %344
      %v347 = vadd.f32 %v320, %v345
      %v348 = vadd.f32 %v325, %v345
      %v349 = vadd.f32 %v330, %v345
      %v350 = vadd.f32 %v335, %v345
      %353 = vrot.lane.b32.xlu0 %v320, 96
      %v354 = vpop.permute.xlu0 %353
      %355 = vrot.lane.b32.xlu0 %v325, 96
      %v356 = vpop.permute.xlu0 %355
      %v357 = vsel %vm240, %v354, 0
      %v359 = vsel %vm240, %v356, 0
      %v361 = vsel %vm240, %v320, 0
      %v363 = vsel %vm240, %v325, 0
      %365 = vmatprep.subr.mxu0 0.0
      %366 = vmatpush1.xpose.msra.mxu0 0.0
      %367 = vmatprep.subr.mxu0 0.0
      %368 = vmatpush1.xpose.msra.mxu0 0.0
      %369 = vmatprep.subr.mxu0 0.0
      %370 = vmatpush1.xpose.msra.mxu0 0.0
      %371 = vmatprep.subr.mxu0 0.0
      %372 = vmatpush1.xpose.msra.mxu0 0.0
      %373 = vmatprep.subr.mxu0 0.0
      %374 = vmatpush1.xpose.msra.mxu0 0.0
      %375 = vmatprep.subr.mxu0 0.0
      %376 = vmatpush1.xpose.msra.mxu0 0.0
      %377 = vmatprep.subr.mxu0 0.0
      %378 = vmatpush1.xpose.msra.mxu0 0.0
      %379 = vmatprep.subr.mxu0 0.0
      %380 = vmatpush1.xpose.msra.mxu0 0.0
      %381 = vmatprep.subr.mxu0 0.0
      %382 = vmatpush1.xpose.msra.mxu0 0.0
      %383 = vmatprep.subr.mxu0 0.0
      %384 = vmatpush1.xpose.msra.mxu0 0.0
      %385 = vmatprep.subr.mxu0 0.0
      %386 = vmatpush1.xpose.msra.mxu0 0.0
      %387 = vmatprep.subr.mxu0 0.0
      %388 = vmatpush1.xpose.msra.mxu0 0.0
      %389 = vmatprep.subr.mxu0 0.0
      %390 = vmatpush1.xpose.msra.mxu0 0.0
      %391 = vmatprep.subr.mxu0 0.0
      %392 = vmatpush1.xpose.msra.mxu0 0.0
      %393 = vmatprep.subr.mxu0 0.0
      %394 = vmatpush1.xpose.msra.mxu0 %v363
      %395 = vmatprep.subr.mxu0 0.0
      %396 = vmatpush1.xpose.msra.mxu0 %v361
      %397 = vmatprep.subr.mxu0 0.0
      %398 = vmatpush2.xpose.msra.mxu0 0.0
      %399 = vmatprep.subr.mxu0 0.0
      %400 = vmatpush2.xpose.msra.mxu0 0.0
      %401 = vmatprep.subr.mxu0 0.0
      %402 = vmatpush2.xpose.msra.mxu0 0.0
      %403 = vmatprep.subr.mxu0 0.0
      %404 = vmatpush2.xpose.msra.mxu0 0.0
      %405 = vmatprep.subr.mxu0 0.0
      %406 = vmatpush2.xpose.msra.mxu0 0.0
      %407 = vmatprep.subr.mxu0 0.0
      %408 = vmatpush2.xpose.msra.mxu0 0.0
      %409 = vmatprep.subr.mxu0 0.0
      %410 = vmatpush2.xpose.msra.mxu0 0.0
      %411 = vmatprep.subr.mxu0 0.0
      %412 = vmatpush2.xpose.msra.mxu0 0.0
      %413 = vmatprep.subr.mxu0 0.0
      %414 = vmatpush2.xpose.msra.mxu0 0.0
      %415 = vmatprep.subr.mxu0 0.0
      %416 = vmatpush2.xpose.msra.mxu0 0.0
      %417 = vmatprep.subr.mxu0 0.0
      %418 = vmatpush2.xpose.msra.mxu0 0.0
      %419 = vmatprep.subr.mxu0 0.0
      %420 = vmatpush2.xpose.msra.mxu0 0.0
      %421 = vmatprep.subr.mxu0 0.0
      %422 = vmatpush2.xpose.msra.mxu0 0.0
      %423 = vmatprep.subr.mxu0 0.0
      %424 = vmatpush2.xpose.msra.mxu0 0.0
      %425 = vmatprep.subr.mxu0 0.0
      %426 = vmatpush2.xpose.msra.mxu0 0.0
      %427 = vmatprep.subr.mxu0 0.0
      %428 = vmatpush2.xpose.msra.mxu0 0.0
      %429 = vmatprep.mubr.f32.mxu0 0.0
      %430 = vmatmul.mubr.f32.gmra.mxu0 %v357
      %v431 = vpop.f32.mrf.mxu0
      %v432 = vadd.f32 0.0, %v431
      %v433 = vpop.f32.mrf.mxu0
      %434 = vmatprep.mubr.f32.mxu0 0.0
      %435 = vmatmul.mubr.f32.gmra.mxu0 %v359
      %v436 = vpop.f32.mrf.mxu0
      %v437 = vadd.f32 0.0, %v436
      %v438 = vpop.f32.mrf.mxu0
      %439 = vdwg.mxu0
      %442 = vrot.lane.b32.xlu0 %v330, 96
      %v443 = vpop.permute.xlu0 %442
      %444 = vrot.lane.b32.xlu0 %v335, 96
      %v445 = vpop.permute.xlu0 %444
      %v446 = vsel %vm240, %v443, 0
      %v448 = vsel %vm240, %v445, 0
      %v450 = vsel %vm240, %v330, 0
      %v452 = vsel %vm240, %v335, 0
      %454 = vmatprep.subr.mxu0 0.0
      %455 = vmatpush1.xpose.msra.mxu0 0.0
      %456 = vmatprep.subr.mxu0 0.0
      %457 = vmatpush1.xpose.msra.mxu0 0.0
      %458 = vmatprep.subr.mxu0 0.0
      %459 = vmatpush1.xpose.msra.mxu0 0.0
      %460 = vmatprep.subr.mxu0 0.0
      %461 = vmatpush1.xpose.msra.mxu0 0.0
      %462 = vmatprep.subr.mxu0 0.0
      %463 = vmatpush1.xpose.msra.mxu0 0.0
      %464 = vmatprep.subr.mxu0 0.0
      %465 = vmatpush1.xpose.msra.mxu0 0.0
      %466 = vmatprep.subr.mxu0 0.0
      %467 = vmatpush1.xpose.msra.mxu0 0.0
      %468 = vmatprep.subr.mxu0 0.0
      %469 = vmatpush1.xpose.msra.mxu0 0.0
      %470 = vmatprep.subr.mxu0 0.0
      %471 = vmatpush1.xpose.msra.mxu0 0.0
      %472 = vmatprep.subr.mxu0 0.0
      %473 = vmatpush1.xpose.msra.mxu0 0.0
      %474 = vmatprep.subr.mxu0 0.0
      %475 = vmatpush1.xpose.msra.mxu0 0.0
      %476 = vmatprep.subr.mxu0 0.0
      %477 = vmatpush1.xpose.msra.mxu0 0.0
      %478 = vmatprep.subr.mxu0 0.0
      %479 = vmatpush1.xpose.msra.mxu0 0.0
      %480 = vmatprep.subr.mxu0 0.0
      %481 = vmatpush1.xpose.msra.mxu0 0.0
      %482 = vmatprep.subr.mxu0 0.0
      %483 = vmatpush1.xpose.msra.mxu0 %v452
      %484 = vmatprep.subr.mxu0 0.0
      %485 = vmatpush1.xpose.msra.mxu0 %v450
      %486 = vmatprep.subr.mxu0 0.0
      %487 = vmatpush2.xpose.msra.mxu0 0.0
      %488 = vmatprep.subr.mxu0 0.0
      %489 = vmatpush2.xpose.msra.mxu0 0.0
      %490 = vmatprep.subr.mxu0 0.0
      %491 = vmatpush2.xpose.msra.mxu0 0.0
      %492 = vmatprep.subr.mxu0 0.0
      %493 = vmatpush2.xpose.msra.mxu0 0.0
      %494 = vmatprep.subr.mxu0 0.0
      %495 = vmatpush2.xpose.msra.mxu0 0.0
      %496 = vmatprep.subr.mxu0 0.0
      %497 = vmatpush2.xpose.msra.mxu0 0.0
      %498 = vmatprep.subr.mxu0 0.0
      %499 = vmatpush2.xpose.msra.mxu0 0.0
      %500 = vmatprep.subr.mxu0 0.0
      %501 = vmatpush2.xpose.msra.mxu0 0.0
      %502 = vmatprep.subr.mxu0 0.0
      %503 = vmatpush2.xpose.msra.mxu0 0.0
      %504 = vmatprep.subr.mxu0 0.0
      %505 = vmatpush2.xpose.msra.mxu0 0.0
      %506 = vmatprep.subr.mxu0 0.0
      %507 = vmatpush2.xpose.msra.mxu0 0.0
      %508 = vmatprep.subr.mxu0 0.0
      %509 = vmatpush2.xpose.msra.mxu0 0.0
      %510 = vmatprep.subr.mxu0 0.0
      %511 = vmatpush2.xpose.msra.mxu0 0.0
      %512 = vmatprep.subr.mxu0 0.0
      %513 = vmatpush2.xpose.msra.mxu0 0.0
      %514 = vmatprep.subr.mxu0 0.0
      %515 = vmatpush2.xpose.msra.mxu0 0.0
      %516 = vmatprep.subr.mxu0 0.0
      %517 = vmatpush2.xpose.msra.mxu0 0.0
      %518 = vmatprep.mubr.f32.mxu0 0.0
      %519 = vmatmul.mubr.f32.gmra.mxu0 %v446
      %v520 = vpop.f32.mrf.mxu0
      %v521 = vadd.f32 0.0, %v520
      %v522 = vpop.f32.mrf.mxu0
      %523 = vmatprep.mubr.f32.mxu0 0.0
      %524 = vmatmul.mubr.f32.gmra.mxu0 %v448
      %v525 = vpop.f32.mrf.mxu0
      %v526 = vadd.f32 0.0, %v525
      %v527 = vpop.f32.mrf.mxu0
      %528 = vdwg.mxu0
      %vm529 = vcmp.gt.f32.partialorder %v232, 0.0
      %vm530 = vcmp.gt.f32.partialorder %v233, 0.0
      %vm531 = vcmp.gt.f32.partialorder %v234, 0.0
      %vm532 = vcmp.gt.f32.partialorder %v235, 0.0
      %v533 = vsel %vm529, %v432, 0.0
      %v534 = vsel %vm530, %v437, 0.0
      %v535 = vsel %vm531, %v521, 0.0
      %v536 = vsel %vm532, %v526, 0.0
      %vm537 = vcmask 130048
      %v538 = vsel %vm537, %v533, -inf
      %539 = vmax.xlane.f32.xlu0 %v538
      %v540 = vpop.xlane.xlu0 %539
      %v541 = vsel %vm537, %v534, -inf
      %542 = vmax.xlane.f32.xlu0 %v541
      %v543 = vpop.xlane.xlu0 %542
      %v544 = vsel %vm537, %v535, -inf
      %545 = vmax.xlane.f32.xlu0 %v544
      %v546 = vpop.xlane.xlu0 %545
      %v547 = vsel %vm537, %v536, -inf
      %548 = vmax.xlane.f32.xlu0 %v547
      %v549 = vpop.xlane.xlu0 %548
      %v550 = vsub.f32 %v533, %v540
      %v551 = vsub.f32 %v534, %v543
      %v552 = vsub.f32 %v535, %v546
      %v553 = vsub.f32 %v536, %v549
      %v554 = vmul.f32 %v550, 1.442695
      %v555 = vpow.pop %v554
      %v556 = vmul.f32 %v551, 1.442695
      %v557 = vpow.pop %v556
      %v558 = vmul.f32 %v552, 1.442695
      %v559 = vpow.pop %v558
      %v560 = vmul.f32 %v553, 1.442695
      %v561 = vpow.pop %v560
      %v562 = vsel %vm537, %v555, 0.0
      %563 = vadd.xlane.f32.xlu0 %v562
      %v564 = vpop.xlane.xlu0 %563
      %v565 = vsel %vm537, %v557, 0.0
      %566 = vadd.xlane.f32.xlu0 %v565
      %v567 = vpop.xlane.xlu0 %566
      %v568 = vsel %vm537, %v559, 0.0
      %569 = vadd.xlane.f32.xlu0 %v568
      %v570 = vpop.xlane.xlu0 %569
      %v571 = vsel %vm537, %v561, 0.0
      %572 = vadd.xlane.f32.xlu0 %v571
      %v573 = vpop.xlane.xlu0 %572
      %v574 = vrcp.pop %v564
      %v575 = vrcp.pop %v567
      %v576 = vrcp.pop %v570
      %v577 = vrcp.pop %v573
      %v578 = vmul.f32 %v555, %v574
      %v579 = vmul.f32 %v557, %v575
      %v580 = vmul.f32 %v559, %v576
      %v581 = vmul.f32 %v561, %v577
      %v582 = vmul.f32 %v578, %v232
      %v583 = vmul.f32 %v579, %v233
      %v584 = vmul.f32 %v580, %v234
      %v585 = vmul.f32 %v581, %v235
      %v587 = vsel %vm537, %v582, 0
      %v590 = vsel %vm537, %v583, 0
      %592 = vmatprep.subr.mxu0 0.0
      %593 = vmatpush1.msra.mxu0 0.0
      %594 = vmatprep.subr.mxu0 0.0
      %595 = vmatpush1.msra.mxu0 0.0
      %596 = vmatprep.subr.mxu0 0.0
      %597 = vmatpush1.msra.mxu0 0.0
      %598 = vmatprep.subr.mxu0 0.0
      %599 = vmatpush1.msra.mxu0 0.0
      %600 = vmatprep.subr.mxu0 0.0
      %601 = vmatpush1.msra.mxu0 0.0
      %602 = vmatprep.subr.mxu0 0.0
      %603 = vmatpush1.msra.mxu0 0.0
      %604 = vmatprep.subr.mxu0 0.0
      %605 = vmatpush1.msra.mxu0 0.0
      %606 = vmatprep.subr.mxu0 0.0
      %607 = vmatpush1.msra.mxu0 0.0
      %608 = vmatprep.subr.mxu0 0.0
      %609 = vmatpush1.msra.mxu0 0.0
      %610 = vmatprep.subr.mxu0 0.0
      %611 = vmatpush1.msra.mxu0 0.0
      %612 = vmatprep.subr.mxu0 0.0
      %613 = vmatpush1.msra.mxu0 0.0
      %614 = vmatprep.subr.mxu0 0.0
      %615 = vmatpush1.msra.mxu0 0.0
      %616 = vmatprep.subr.mxu0 0.0
      %617 = vmatpush1.msra.mxu0 0.0
      %618 = vmatprep.subr.mxu0 0.0
      %619 = vmatpush1.msra.mxu0 0.0
      %620 = vmatprep.subr.mxu0 0.0
      %621 = vmatpush1.msra.mxu0 %v325
      %622 = vmatprep.subr.mxu0 0.0
      %623 = vmatpush1.msra.mxu0 %v320
      %624 = vmatprep.subr.mxu0 0.0
      %625 = vmatpush2.msra.mxu0 0.0
      %626 = vmatprep.subr.mxu0 0.0
      %627 = vmatpush2.msra.mxu0 0.0
      %628 = vmatprep.subr.mxu0 0.0
      %629 = vmatpush2.msra.mxu0 0.0
      %630 = vmatprep.subr.mxu0 0.0
      %631 = vmatpush2.msra.mxu0 0.0
      %632 = vmatprep.subr.mxu0 0.0
      %633 = vmatpush2.msra.mxu0 0.0
      %634 = vmatprep.subr.mxu0 0.0
      %635 = vmatpush2.msra.mxu0 0.0
      %636 = vmatprep.subr.mxu0 0.0
      %637 = vmatpush2.msra.mxu0 0.0
      %638 = vmatprep.subr.mxu0 0.0
      %639 = vmatpush2.msra.mxu0 0.0
      %640 = vmatprep.subr.mxu0 0.0
      %641 = vmatpush2.msra.mxu0 0.0
      %642 = vmatprep.subr.mxu0 0.0
      %643 = vmatpush2.msra.mxu0 0.0
      %644 = vmatprep.subr.mxu0 0.0
      %645 = vmatpush2.msra.mxu0 0.0
      %646 = vmatprep.subr.mxu0 0.0
      %647 = vmatpush2.msra.mxu0 0.0
      %648 = vmatprep.subr.mxu0 0.0
      %649 = vmatpush2.msra.mxu0 0.0
      %650 = vmatprep.subr.mxu0 0.0
      %651 = vmatpush2.msra.mxu0 0.0
      %652 = vmatprep.subr.mxu0 0.0
      %653 = vmatpush2.msra.mxu0 0.0
      %654 = vmatprep.subr.mxu0 0.0
      %655 = vmatpush2.msra.mxu0 0.0
      %656 = vmatprep.mubr.f32.mxu0 0.0
      %657 = vmatmul.mubr.f32.gmra.mxu0 %v587
      %v658 = vpop.f32.mrf.mxu0
      %v659 = vadd.f32 0.0, %v658
      %v660 = vpop.f32.mrf.mxu0
      %661 = vmatprep.mubr.f32.mxu0 0.0
      %662 = vmatmul.mubr.f32.gmra.mxu0 %v590
      %v663 = vpop.f32.mrf.mxu0
      %v664 = vadd.f32 0.0, %v663
      %v665 = vpop.f32.mrf.mxu0
      %666 = vdwg.mxu0
      %v668 = vsel %vm537, %v584, 0
      %v671 = vsel %vm537, %v585, 0
      %673 = vmatprep.subr.mxu0 0.0
      %674 = vmatpush1.msra.mxu0 0.0
      %675 = vmatprep.subr.mxu0 0.0
      %676 = vmatpush1.msra.mxu0 0.0
      %677 = vmatprep.subr.mxu0 0.0
      %678 = vmatpush1.msra.mxu0 0.0
      %679 = vmatprep.subr.mxu0 0.0
      %680 = vmatpush1.msra.mxu0 0.0
      %681 = vmatprep.subr.mxu0 0.0
      %682 = vmatpush1.msra.mxu0 0.0
      %683 = vmatprep.subr.mxu0 0.0
      %684 = vmatpush1.msra.mxu0 0.0
      %685 = vmatprep.subr.mxu0 0.0
      %686 = vmatpush1.msra.mxu0 0.0
      %687 = vmatprep.subr.mxu0 0.0
      %688 = vmatpush1.msra.mxu0 0.0
      %689 = vmatprep.subr.mxu0 0.0
      %690 = vmatpush1.msra.mxu0 0.0
      %691 = vmatprep.subr.mxu0 0.0
      %692 = vmatpush1.msra.mxu0 0.0
      %693 = vmatprep.subr.mxu0 0.0
      %694 = vmatpush1.msra.mxu0 0.0
      %695 = vmatprep.subr.mxu0 0.0
      %696 = vmatpush1.msra.mxu0 0.0
      %697 = vmatprep.subr.mxu0 0.0
      %698 = vmatpush1.msra.mxu0 0.0
      %699 = vmatprep.subr.mxu0 0.0
      %700 = vmatpush1.msra.mxu0 0.0
      %701 = vmatprep.subr.mxu0 0.0
      %702 = vmatpush1.msra.mxu0 %v335
      %703 = vmatprep.subr.mxu0 0.0
      %704 = vmatpush1.msra.mxu0 %v330
      %705 = vmatprep.subr.mxu0 0.0
      %706 = vmatpush2.msra.mxu0 0.0
      %707 = vmatprep.subr.mxu0 0.0
      %708 = vmatpush2.msra.mxu0 0.0
      %709 = vmatprep.subr.mxu0 0.0
      %710 = vmatpush2.msra.mxu0 0.0
      %711 = vmatprep.subr.mxu0 0.0
      %712 = vmatpush2.msra.mxu0 0.0
      %713 = vmatprep.subr.mxu0 0.0
      %714 = vmatpush2.msra.mxu0 0.0
      %715 = vmatprep.subr.mxu0 0.0
      %716 = vmatpush2.msra.mxu0 0.0
      %717 = vmatprep.subr.mxu0 0.0
      %718 = vmatpush2.msra.mxu0 0.0
      %719 = vmatprep.subr.mxu0 0.0
      %720 = vmatpush2.msra.mxu0 0.0
      %721 = vmatprep.subr.mxu0 0.0
      %722 = vmatpush2.msra.mxu0 0.0
      %723 = vmatprep.subr.mxu0 0.0
      %724 = vmatpush2.msra.mxu0 0.0
      %725 = vmatprep.subr.mxu0 0.0
      %726 = vmatpush2.msra.mxu0 0.0
      %727 = vmatprep.subr.mxu0 0.0
      %728 = vmatpush2.msra.mxu0 0.0
      %729 = vmatprep.subr.mxu0 0.0
      %730 = vmatpush2.msra.mxu0 0.0
      %731 = vmatprep.subr.mxu0 0.0
      %732 = vmatpush2.msra.mxu0 0.0
      %733 = vmatprep.subr.mxu0 0.0
      %734 = vmatpush2.msra.mxu0 0.0
      %735 = vmatprep.subr.mxu0 0.0
      %736 = vmatpush2.msra.mxu0 0.0
      %737 = vmatprep.mubr.f32.mxu0 0.0
      %738 = vmatmul.mubr.f32.gmra.mxu0 %v668
      %v739 = vpop.f32.mrf.mxu0
      %v740 = vadd.f32 0.0, %v739
      %v741 = vpop.f32.mrf.mxu0
      %742 = vmatprep.mubr.f32.mxu0 0.0
      %743 = vmatmul.mubr.f32.gmra.mxu0 %v671
      %v744 = vpop.f32.mrf.mxu0
      %v745 = vadd.f32 0.0, %v744
      %v746 = vpop.f32.mrf.mxu0
      %747 = vdwg.mxu0
      %v748 = vxor.u32 %v347, 2147483648
      %v749 = vxor.u32 %v348, 2147483648
      %v750 = vxor.u32 %v349, 2147483648
      %v751 = vxor.u32 %v350, 2147483648
      %v752 = vmul.f32 %v748, 1.442695
      %v753 = vpow.pop %v752
      %v754 = vmul.f32 %v749, 1.442695
      %v755 = vpow.pop %v754
      %v756 = vmul.f32 %v750, 1.442695
      %v757 = vpow.pop %v756
      %v758 = vmul.f32 %v751, 1.442695
      %v759 = vpow.pop %v758
      %v760 = vadd.f32 %v753, 1.0
      %v761 = vadd.f32 %v755, 1.0
      %v762 = vadd.f32 %v757, 1.0
      %v763 = vadd.f32 %v759, 1.0
      %v764 = vrcp.pop %v760
      %v765 = vmul.f32 1.0, %v764
      %v766 = vrcp.pop %v761
      %v767 = vmul.f32 1.0, %v766
      %v768 = vrcp.pop %v762
      %v769 = vmul.f32 1.0, %v768
      %v770 = vrcp.pop %v763
      %v771 = vmul.f32 1.0, %v770
      %773 = vset.pattern.permute.xlu0 64
      %774 = vperm.xlu0 %773, %v765
      %v775 = vpop.permute.xlu0 %774
      %778 = vset.pattern.permute.xlu0 64
      %779 = vperm.xlu0 %778, %v767
      %v780 = vpop.permute.xlu0 %779
      %783 = vset.pattern.permute.xlu0 64
      %784 = vperm.xlu0 %783, %v769
      %v785 = vpop.permute.xlu0 %784
      %788 = vset.pattern.permute.xlu0 64
      %789 = vperm.xlu0 %788, %v771
      %v790 = vpop.permute.xlu0 %789
      %v792 = vmul.f32 %v775, %v320
      %v793 = vmul.f32 %v780, %v325
      %v794 = vmul.f32 %v785, %v330
      %v795 = vmul.f32 %v790, %v335
      %v796 = vsub.f32 1.0, %v765
      %v797 = vsub.f32 1.0, %v767
      %v798 = vsub.f32 1.0, %v769
      %v799 = vsub.f32 1.0, %v771
      %801 = vset.pattern.permute.xlu0 64
      %802 = vperm.xlu0 %801, %v796
      %v803 = vpop.permute.xlu0 %802
      %806 = vset.pattern.permute.xlu0 64
      %807 = vperm.xlu0 %806, %v797
      %v808 = vpop.permute.xlu0 %807
      %811 = vset.pattern.permute.xlu0 64
      %812 = vperm.xlu0 %811, %v798
      %v813 = vpop.permute.xlu0 %812
      %816 = vset.pattern.permute.xlu0 64
      %817 = vperm.xlu0 %816, %v799
      %v818 = vpop.permute.xlu0 %817
      %v820 = vmul.f32 %v803, %v659
      %v821 = vmul.f32 %v808, %v664
      %v822 = vmul.f32 %v813, %v740
      %v823 = vmul.f32 %v818, %v745
      %v824 = vadd.f32 %v792, %v820
      %v825 = vadd.f32 %v793, %v821
      %v826 = vadd.f32 %v794, %v822
      %v827 = vadd.f32 %v795, %v823
      %828 = vst.msk [vmem:[%s226] sm:$0xff] %vm240, %v824
      %829 = vst.msk [vmem:[%s226 + $0x8] sm:$0xff] %vm240, %v825
      %830 = vst.msk [vmem:[%s226 + $0x10] sm:$0xff] %vm240, %v826
      %831 = vst.msk [vmem:[%s226 + $0x18] sm:$0xff] %vm240, %v827
      %s832 = smul.u32 4, %s17
      %p833 = scmp.lt.s32.totalorder %s832, 7
      %s834 = scalar_select %p833, %s832, 7
      %s835 = smul.addr %s834, 8
      %s836 = scalar_lea.vmem %s4, %s835
      // Predicated region
      $region37: #{tpu_custom_call.1} parent=35 // pred_check
        %p837 = pneg %p129
      $region38: #{tpu_custom_call.1} parent=35 // pred_check_branch
        %839 = sbr.rel (%p837) target = $region40
      $region39: #{tpu_custom_call.1} parent=35 // pred_region
        %s840 = smul.u32 4, %s17
      $region40: #{tpu_custom_call.1} parent=35 // pred_fallthru
        _
    $region36: #{tpu_custom_call.1} parent=5 // pred_fallthru
      _
    %p841 = scmp.le.s32.totalorder 2, %s12
    // Predicated region
    $region41: #{tpu_custom_call.1} parent=5 // pred_check
      %p842 = pneg %p841
    $region42: #{tpu_custom_call.1} parent=5 // pred_check_branch
      %844 = sbr.rel (%p842) target = $region44
    $region43: #{tpu_custom_call.1} parent=5 // pred_region
      %s845 = ssub.s32 %s12, 2
      // Predicated region
      $region45: #{tpu_custom_call.1} parent=43 // pred_check
        %p846 = pneg %p135
      $region46: #{tpu_custom_call.1} parent=43 // pred_check_branch
        %848 = sbr.rel (%p846) target = $region48
      $region47: #{tpu_custom_call.1} parent=43 // pred_region
        %s849 = smul.u32 4, %s18
        %p850 = scmp.lt.s32.totalorder %s849, 7
        %s851 = scalar_select %p850, %s849, 7
        %s852 = smul.addr %s851, 8
        %s853 = scalar_lea.vmem %s4, %s852
      $region48: #{tpu_custom_call.1} parent=43 // pred_fallthru
        _
    $region44: #{tpu_custom_call.1} parent=5 // pred_fallthru
      _
  $region6: #{tpu_custom_call.1} parent=0 // loop_footer
    %s16 = sadd.s32 1, %s12
  $region7: #{tpu_custom_call.1} parent=0 // loop_footer_branch
    %11 = sbr.rel target = $region3
  $region8: #{tpu_custom_call.1} parent=0 // loop_exit
    _

</llo_original>
